<compile_context>
chip_gen: v5e
topology: v5e:2x2
jax: 0.10.0
libtpu: 0.0.40
codegen_flags: <defaults>
</compile_context>

<pallas_src>
import functools

import jax
import jax.numpy as jnp
from jax.experimental import pallas as pl
from jax.experimental.pallas import tpu as pltpu

_EPS_LOG = 1e-16   # clamp inside log(q) (KL_div style)
_EPS_NORM = 1e-8   # _l2_normalize epsilon


# ---------------------------------------------------------------------------
# Fused kernel: one grid step == one sample.
# ---------------------------------------------------------------------------
def _cons_vat_kernel(x_ref, d0_ref, q_ref, w_ref, b_ref, out_ref,
                     *, xi, eps, temp, ip, n_cin, n_k):
    """Fused consVAT forward for one sample.

    x_ref  : (1, Cin, HW)  VMEM  input image (lane-dense over HW)
    d0_ref : (1, Cin, HW)  VMEM  raw gaussian noise (randn_like(x))
    q_ref  : (1, K,   HW)  VMEM  detached prediction simplex (predx)
    w_ref  : (Cin, K)      SMEM  1x1-conv weight (scalar reads)
    b_ref  : (1, K)        SMEM  1x1-conv bias   (scalar reads)
    out_ref: (1, 1, 128)   VMEM  per-sample class+pixel-summed KL (broadcast)
    """
    inv_temp = 1.0 / float(temp)

    x = x_ref[0]                                    # (Cin, HW)
    q = q_ref[0]                                    # (K,  HW)
    x_rows = [x[c:c + 1, :] for c in range(n_cin)]  # lane-dense (1, HW) rows
    q_rows = [q[k:k + 1, :] for k in range(n_k)]

    def l2_normalize_rows(rows):
        """d / (||d||_2 + eps) over all non-batch dims; rows are (1, HW)."""
        sq = rows[0] * rows[0]
        for r in rows[1:]:
            sq = sq + r * r
        norm = jnp.sqrt(jnp.sum(sq))
        inv = 1.0 / (norm + _EPS_NORM)
        return [r * inv for r in rows]

    def head(xp_rows):
        """z_k = (sum_c xp_c * w[c,k] + b_k)/temp via unrolled VPU FMAs.

        Returns z rows, exp(z - m) rows, running max m and softmax denom s
        (all (1, HW)); softmax reductions over K are unrolled VPU max/adds
        on full-width lane-dense rows (no XLU cross-lane reduce, no MXU).
        """
        z_rows = []
        for k in range(n_k):
            zk = xp_rows[0] * w_ref[0, k]
            for c in range(1, n_cin):
                zk = zk + xp_rows[c] * w_ref[c, k]
            z_rows.append((zk + b_ref[0, k]) * inv_temp)
        m = z_rows[0]
        for zk in z_rows[1:]:
            m = jnp.maximum(m, zk)
        e_rows = [jnp.exp(zk - m) for zk in z_rows]
        s = e_rows[0]
        for ek in e_rows[1:]:
            s = s + ek
        return z_rows, e_rows, m, s

    # d = _l2_normalize(torch.randn_like(x))
    d0 = d0_ref[0]
    d_rows = l2_normalize_rows([d0[c:c + 1, :] for c in range(n_cin)])

    # Power iteration(s): d <- normalize( d/dd KL(predx || softmax(model(x+xi*d)/T)) )
    # The positive scalar factors inv_m, xi and 1/temp of the analytic
    # gradient cancel under the subsequent l2-normalization and are dropped.
    for _ in range(ip):                             # small static ip -> unrolled
        xp_rows = [x_rows[c] + xi * d_rows[c] for c in range(n_cin)]
        _, e_rows, _, s = head(xp_rows)
        inv_s = pl.reciprocal(s, approx=True)       # EUP, off the VPU slot
        g_rows = [e_rows[k] * inv_s - q_rows[k] for k in range(n_k)]  # p - q
        gd_rows = []                                # g @ W^T  (transpose head)
        for c in range(n_cin):
            gc = g_rows[0] * w_ref[c, 0]
            for k in range(1, n_k):
                gc = gc + g_rows[k] * w_ref[c, k]
            gd_rows.append(gc)
        d_rows = l2_normalize_rows(gd_rows)
        # TODO(synk): gradient contribution of consweight * reinforce_cons_loss
        # (REINFORCE connectivity constraint) is not representable in Pallas.

    # LDS: pred_hat = softmax(model(x + eps*d)/temp); KL(predx || pred_hat)
    # with log(pred_hat) = z - m - log(sum exp) (no epsilon bias on p).
    xp_rows = [x_rows[c] + eps * d_rows[c] for c in range(n_cin)]
    z_rows, _, m, s = head(xp_rows)
    log_s = jnp.log(s)
    kl_row = q_rows[0] * (jnp.log(q_rows[0] + _EPS_LOG) - (z_rows[0] - m - log_s))
    for k in range(1, n_k):
        kl_row = kl_row + q_rows[k] * (
            jnp.log(q_rows[k] + _EPS_LOG) - (z_rows[k] - m - log_s))
    kl = jnp.sum(kl_row)                            # per-sample sum (class + pixel)

    # Lane-dense scalar writeback: broadcast into a full 128-lane row so the
    # store is an unmasked vst (no (N, HW, 1) masked partial-store writeback).
    out_ref[0] = jnp.full((1, 128), kl, dtype=out_ref.dtype)


# ---------------------------------------------------------------------------
# Wrapper
# ---------------------------------------------------------------------------
def cons_vat_loss_forward(x_nchw, pred_nchw, w, b, key, *,
                          xi=10.0, eps=1.0, ip=1, temp=1.0, consweight=0.5):
    N, Cin, H, Wsp = x_nchw.shape
    K = pred_nchw.shape[1]
    HW = H * Wsp

    # NCHW flatten keeps HW on the lane (last) axis — no transpose needed.
    x = x_nchw.reshape(N, Cin, HW).astype(jnp.float32)
    q = pred_nchw.reshape(N, K, HW).astype(jnp.float32)
    w_s = w.astype(jnp.float32)                     # (Cin, K) -> SMEM scalars
    b_s = b.reshape(1, K).astype(jnp.float32)       # (1, K)   -> SMEM scalars

    # d0 = torch.randn_like(x); normalized inside the kernel.
    d0 = jax.random.normal(key, x.shape, dtype=jnp.float32)

    kernel = functools.partial(
        _cons_vat_kernel,
        xi=float(xi), eps=float(eps), temp=float(temp),
        ip=int(ip), n_cin=Cin, n_k=K)
    # TODO(synk): tensor-valued per-sample `eps` (the torch.Tensor branch) is
    # not supported; only float/int eps is handled here.

    samp_spec = lambda C: pl.BlockSpec((1, C, HW), lambda n: (n, 0, 0))
    smem_spec = pl.BlockSpec(memory_space=pltpu.MemorySpace.SMEM)

    kl_per_sample = pl.pallas_call(
        kernel,
        grid=(N,),
        in_specs=[samp_spec(Cin),        # x
                  samp_spec(Cin),        # d0 (raw noise)
                  samp_spec(K),          # predx (detached simplex)
                  smem_spec,             # w
                  smem_spec],            # b
        out_specs=pl.BlockSpec((1, 1, 128), lambda n: (n, 0, 0)),
        out_shape=jax.ShapeDtypeStruct((N, 1, 128), jnp.float32),
        compiler_params=pltpu.CompilerParams(
            dimension_semantics=("parallel",)),     # batch axis -> 2 TCs on v7x
    )(x, d0, q, w_s, b_s)

    # lds = KL(predx || pred_hat): summed over classes, averaged over N*H*W.
    lds = jnp.sum(kl_per_sample[:, 0, 0]) / jnp.float32(N * HW)

    # TODO(synk): reinforce_cons_loss (REINFORCE connectivity constraint with
    # filename / epoch / tensorboard-writer bookkeeping) has no Pallas
    # equivalent; the `cons` term is returned as 0.
    cons = jnp.float32(0.0)
    return lds, cons


# ---------------------------------------------------------------------------
if __name__ == "__main__":
    key = jax.random.PRNGKey(0)
    kx, kw, kb, kd = jax.random.split(key, 4)

    N, Cin, H, Wsp, K = 2, 4, 16, 16, 4
    temp = 1.0

    x = jax.random.normal(kx, (N, Cin, H, Wsp), dtype=jnp.float32)

    # Deterministic synthetic "model": 1x1 conv (Cin -> K classes) + bias.
    w = jax.random.normal(kw, (Cin, K), dtype=jnp.float32) * 0.5
    b = jax.random.normal(kb, (K,), dtype=jnp.float32) * 0.1

    # pred = model(x).softmax(1) (detached), NCHW like PyTorch.
    logits = jnp.einsum("nchw,ck->nkhw", x, w) + b[None, :, None, None]
    pred = jax.nn.softmax(logits / temp, axis=1)

    lds, cons = cons_vat_loss_forward(x, pred, w, b, kd,
                                      xi=10.0, eps=1.0, ip=1, temp=temp,
                                      consweight=0.5)
    jax.block_until_ready((lds, cons))
    print("KERNEL_OK")
</pallas_src>

<mosaic_0001>
module attributes {stable_mosaic.version = 11 : i64} {
  func.func @_cons_vat_kernel(%arg0: i32, %arg1: memref<1x4x256xf32, #tpu.memory_space<vmem>>, %arg2: memref<1x4x256xf32, #tpu.memory_space<vmem>>, %arg3: memref<1x4x256xf32, #tpu.memory_space<vmem>>, %arg4: memref<4x4xf32, #tpu.memory_space<smem>>, %arg5: memref<1x4xf32, #tpu.memory_space<smem>>, %arg6: memref<1x1x128xf32, #tpu.memory_space<vmem>>) attributes {dimension_semantics = [#tpu.dimension_semantics<parallel>], iteration_bounds = array<i64: 2>, scalar_prefetch = 0 : i64, scratch_operands = 0 : i64, tpu.core_type = #tpu.core_type<tc>, window_params = [{transform_indices = @transform_0, window_bounds = array<i64: 1, 4, 256>}, {transform_indices = @transform_1, window_bounds = array<i64: 1, 4, 256>}, {transform_indices = @transform_2, window_bounds = array<i64: 1, 4, 256>}, {transform_indices = @transform_3, window_bounds = array<i64: 4, 4>}, {transform_indices = @transform_4, window_bounds = array<i64: 1, 4>}, {transform_indices = @transform_5, window_bounds = array<i64: 1, 1, 128>}]} {
    %c0 = arith.constant 0 : index
    %c0_0 = arith.constant 0 : index
    %c0_1 = arith.constant 0 : index
    %0 = vector.load %arg1[%c0, %c0_0, %c0_1] : memref<1x4x256xf32, #tpu.memory_space<vmem>>, vector<1x4x256xf32>
    %1 = vector.shape_cast %0 : vector<1x4x256xf32> to vector<4x256xf32>
    %c0_2 = arith.constant 0 : index
    %c0_3 = arith.constant 0 : index
    %c0_4 = arith.constant 0 : index
    %2 = vector.load %arg3[%c0_2, %c0_3, %c0_4] : memref<1x4x256xf32, #tpu.memory_space<vmem>>, vector<1x4x256xf32>
    %3 = vector.shape_cast %2 : vector<1x4x256xf32> to vector<4x256xf32>
    %4 = vector.extract_strided_slice %1 {offsets = [0, 0], sizes = [1, 256], strides = [1, 1]} : vector<4x256xf32> to vector<1x256xf32>
    %5 = vector.extract_strided_slice %1 {offsets = [1, 0], sizes = [1, 256], strides = [1, 1]} : vector<4x256xf32> to vector<1x256xf32>
    %6 = vector.extract_strided_slice %1 {offsets = [2, 0], sizes = [1, 256], strides = [1, 1]} : vector<4x256xf32> to vector<1x256xf32>
    %7 = vector.extract_strided_slice %1 {offsets = [3, 0], sizes = [1, 256], strides = [1, 1]} : vector<4x256xf32> to vector<1x256xf32>
    %8 = vector.extract_strided_slice %3 {offsets = [0, 0], sizes = [1, 256], strides = [1, 1]} : vector<4x256xf32> to vector<1x256xf32>
    %9 = vector.extract_strided_slice %3 {offsets = [1, 0], sizes = [1, 256], strides = [1, 1]} : vector<4x256xf32> to vector<1x256xf32>
    %10 = vector.extract_strided_slice %3 {offsets = [2, 0], sizes = [1, 256], strides = [1, 1]} : vector<4x256xf32> to vector<1x256xf32>
    %11 = vector.extract_strided_slice %3 {offsets = [3, 0], sizes = [1, 256], strides = [1, 1]} : vector<4x256xf32> to vector<1x256xf32>
    %c0_5 = arith.constant 0 : index
    %c0_6 = arith.constant 0 : index
    %c0_7 = arith.constant 0 : index
    %12 = vector.load %arg2[%c0_5, %c0_6, %c0_7] : memref<1x4x256xf32, #tpu.memory_space<vmem>>, vector<1x4x256xf32>
    %13 = vector.shape_cast %12 : vector<1x4x256xf32> to vector<4x256xf32>
    %14 = vector.extract_strided_slice %13 {offsets = [0, 0], sizes = [1, 256], strides = [1, 1]} : vector<4x256xf32> to vector<1x256xf32>
    %15 = vector.extract_strided_slice %13 {offsets = [1, 0], sizes = [1, 256], strides = [1, 1]} : vector<4x256xf32> to vector<1x256xf32>
    %16 = vector.extract_strided_slice %13 {offsets = [2, 0], sizes = [1, 256], strides = [1, 1]} : vector<4x256xf32> to vector<1x256xf32>
    %17 = vector.extract_strided_slice %13 {offsets = [3, 0], sizes = [1, 256], strides = [1, 1]} : vector<4x256xf32> to vector<1x256xf32>
    %18 = arith.mulf %14, %14 : vector<1x256xf32>
    %19 = arith.mulf %15, %15 : vector<1x256xf32>
    %20 = arith.addf %18, %19 : vector<1x256xf32>
    %21 = arith.mulf %16, %16 : vector<1x256xf32>
    %22 = arith.addf %20, %21 : vector<1x256xf32>
    %23 = arith.mulf %17, %17 : vector<1x256xf32>
    %24 = arith.addf %22, %23 : vector<1x256xf32>
    %25 = vector.shape_cast %24 : vector<1x256xf32> to vector<1x1x256xf32>
    %cst = arith.constant dense<0.000000e+00> : vector<1xf32>
    %26 = vector.multi_reduction <add>, %25, %cst [1, 2] : vector<1x1x256xf32> to vector<1xf32>
    %27 = vector.shape_cast %26 : vector<1xf32> to vector<1x1x1xf32>
    %28 = vector.extract %27[0, 0, 0] : f32 from vector<1x1x1xf32>
    %29 = math.sqrt %28 : f32
    %cst_8 = arith.constant 9.99999993E-9 : f32
    %30 = arith.addf %29, %cst_8 : f32
    %cst_9 = arith.constant 1.000000e+00 : f32
    %31 = arith.divf %cst_9, %30 : f32
    %32 = vector.broadcast %31 : f32 to vector<1x256xf32>
    %33 = arith.mulf %14, %32 : vector<1x256xf32>
    %34 = vector.broadcast %31 : f32 to vector<1x256xf32>
    %35 = arith.mulf %15, %34 : vector<1x256xf32>
    %36 = vector.broadcast %31 : f32 to vector<1x256xf32>
    %37 = arith.mulf %16, %36 : vector<1x256xf32>
    %38 = vector.broadcast %31 : f32 to vector<1x256xf32>
    %39 = arith.mulf %17, %38 : vector<1x256xf32>
    %cst_10 = arith.constant 1.000000e+01 : f32
    %40 = vector.broadcast %cst_10 : f32 to vector<1x256xf32>
    %41 = arith.mulf %40, %33 : vector<1x256xf32>
    %42 = arith.addf %4, %41 : vector<1x256xf32>
    %cst_11 = arith.constant 1.000000e+01 : f32
    %43 = vector.broadcast %cst_11 : f32 to vector<1x256xf32>
    %44 = arith.mulf %43, %35 : vector<1x256xf32>
    %45 = arith.addf %5, %44 : vector<1x256xf32>
    %cst_12 = arith.constant 1.000000e+01 : f32
    %46 = vector.broadcast %cst_12 : f32 to vector<1x256xf32>
    %47 = arith.mulf %46, %37 : vector<1x256xf32>
    %48 = arith.addf %6, %47 : vector<1x256xf32>
    %cst_13 = arith.constant 1.000000e+01 : f32
    %49 = vector.broadcast %cst_13 : f32 to vector<1x256xf32>
    %50 = arith.mulf %49, %39 : vector<1x256xf32>
    %51 = arith.addf %7, %50 : vector<1x256xf32>
    %c0_14 = arith.constant 0 : index
    %c0_15 = arith.constant 0 : index
    %52 = memref.load %arg4[%c0_14, %c0_15] : memref<4x4xf32, #tpu.memory_space<smem>>
    %53 = vector.broadcast %52 : f32 to vector<1x256xf32>
    %54 = arith.mulf %42, %53 : vector<1x256xf32>
    %c1 = arith.constant 1 : index
    %c0_16 = arith.constant 0 : index
    %55 = memref.load %arg4[%c1, %c0_16] : memref<4x4xf32, #tpu.memory_space<smem>>
    %56 = vector.broadcast %55 : f32 to vector<1x256xf32>
    %57 = arith.mulf %45, %56 : vector<1x256xf32>
    %58 = arith.addf %54, %57 : vector<1x256xf32>
    %c2 = arith.constant 2 : index
    %c0_17 = arith.constant 0 : index
    %59 = memref.load %arg4[%c2, %c0_17] : memref<4x4xf32, #tpu.memory_space<smem>>
    %60 = vector.broadcast %59 : f32 to vector<1x256xf32>
    %61 = arith.mulf %48, %60 : vector<1x256xf32>
    %62 = arith.addf %58, %61 : vector<1x256xf32>
    %c3 = arith.constant 3 : index
    %c0_18 = arith.constant 0 : index
    %63 = memref.load %arg4[%c3, %c0_18] : memref<4x4xf32, #tpu.memory_space<smem>>
    %64 = vector.broadcast %63 : f32 to vector<1x256xf32>
    %65 = arith.mulf %51, %64 : vector<1x256xf32>
    %66 = arith.addf %62, %65 : vector<1x256xf32>
    %c0_19 = arith.constant 0 : index
    %c0_20 = arith.constant 0 : index
    %67 = memref.load %arg5[%c0_19, %c0_20] : memref<1x4xf32, #tpu.memory_space<smem>>
    %68 = vector.broadcast %67 : f32 to vector<1x256xf32>
    %69 = arith.addf %66, %68 : vector<1x256xf32>
    %cst_21 = arith.constant 1.000000e+00 : f32
    %70 = vector.broadcast %cst_21 : f32 to vector<1x256xf32>
    %71 = arith.mulf %69, %70 : vector<1x256xf32>
    %c0_22 = arith.constant 0 : index
    %c1_23 = arith.constant 1 : index
    %72 = memref.load %arg4[%c0_22, %c1_23] : memref<4x4xf32, #tpu.memory_space<smem>>
    %73 = vector.broadcast %72 : f32 to vector<1x256xf32>
    %74 = arith.mulf %42, %73 : vector<1x256xf32>
    %c1_24 = arith.constant 1 : index
    %c1_25 = arith.constant 1 : index
    %75 = memref.load %arg4[%c1_24, %c1_25] : memref<4x4xf32, #tpu.memory_space<smem>>
    %76 = vector.broadcast %75 : f32 to vector<1x256xf32>
    %77 = arith.mulf %45, %76 : vector<1x256xf32>
    %78 = arith.addf %74, %77 : vector<1x256xf32>
    %c2_26 = arith.constant 2 : index
    %c1_27 = arith.constant 1 : index
    %79 = memref.load %arg4[%c2_26, %c1_27] : memref<4x4xf32, #tpu.memory_space<smem>>
    %80 = vector.broadcast %79 : f32 to vector<1x256xf32>
    %81 = arith.mulf %48, %80 : vector<1x256xf32>
    %82 = arith.addf %78, %81 : vector<1x256xf32>
    %c3_28 = arith.constant 3 : index
    %c1_29 = arith.constant 1 : index
    %83 = memref.load %arg4[%c3_28, %c1_29] : memref<4x4xf32, #tpu.memory_space<smem>>
    %84 = vector.broadcast %83 : f32 to vector<1x256xf32>
    %85 = arith.mulf %51, %84 : vector<1x256xf32>
    %86 = arith.addf %82, %85 : vector<1x256xf32>
    %c0_30 = arith.constant 0 : index
    %c1_31 = arith.constant 1 : index
    %87 = memref.load %arg5[%c0_30, %c1_31] : memref<1x4xf32, #tpu.memory_space<smem>>
    %88 = vector.broadcast %87 : f32 to vector<1x256xf32>
    %89 = arith.addf %86, %88 : vector<1x256xf32>
    %cst_32 = arith.constant 1.000000e+00 : f32
    %90 = vector.broadcast %cst_32 : f32 to vector<1x256xf32>
    %91 = arith.mulf %89, %90 : vector<1x256xf32>
    %c0_33 = arith.constant 0 : index
    %c2_34 = arith.constant 2 : index
    %92 = memref.load %arg4[%c0_33, %c2_34] : memref<4x4xf32, #tpu.memory_space<smem>>
    %93 = vector.broadcast %92 : f32 to vector<1x256xf32>
    %94 = arith.mulf %42, %93 : vector<1x256xf32>
    %c1_35 = arith.constant 1 : index
    %c2_36 = arith.constant 2 : index
    %95 = memref.load %arg4[%c1_35, %c2_36] : memref<4x4xf32, #tpu.memory_space<smem>>
    %96 = vector.broadcast %95 : f32 to vector<1x256xf32>
    %97 = arith.mulf %45, %96 : vector<1x256xf32>
    %98 = arith.addf %94, %97 : vector<1x256xf32>
    %c2_37 = arith.constant 2 : index
    %c2_38 = arith.constant 2 : index
    %99 = memref.load %arg4[%c2_37, %c2_38] : memref<4x4xf32, #tpu.memory_space<smem>>
    %100 = vector.broadcast %99 : f32 to vector<1x256xf32>
    %101 = arith.mulf %48, %100 : vector<1x256xf32>
    %102 = arith.addf %98, %101 : vector<1x256xf32>
    %c3_39 = arith.constant 3 : index
    %c2_40 = arith.constant 2 : index
    %103 = memref.load %arg4[%c3_39, %c2_40] : memref<4x4xf32, #tpu.memory_space<smem>>
    %104 = vector.broadcast %103 : f32 to vector<1x256xf32>
    %105 = arith.mulf %51, %104 : vector<1x256xf32>
    %106 = arith.addf %102, %105 : vector<1x256xf32>
    %c0_41 = arith.constant 0 : index
    %c2_42 = arith.constant 2 : index
    %107 = memref.load %arg5[%c0_41, %c2_42] : memref<1x4xf32, #tpu.memory_space<smem>>
    %108 = vector.broadcast %107 : f32 to vector<1x256xf32>
    %109 = arith.addf %106, %108 : vector<1x256xf32>
    %cst_43 = arith.constant 1.000000e+00 : f32
    %110 = vector.broadcast %cst_43 : f32 to vector<1x256xf32>
    %111 = arith.mulf %109, %110 : vector<1x256xf32>
    %c0_44 = arith.constant 0 : index
    %c3_45 = arith.constant 3 : index
    %112 = memref.load %arg4[%c0_44, %c3_45] : memref<4x4xf32, #tpu.memory_space<smem>>
    %113 = vector.broadcast %112 : f32 to vector<1x256xf32>
    %114 = arith.mulf %42, %113 : vector<1x256xf32>
    %c1_46 = arith.constant 1 : index
    %c3_47 = arith.constant 3 : index
    %115 = memref.load %arg4[%c1_46, %c3_47] : memref<4x4xf32, #tpu.memory_space<smem>>
    %116 = vector.broadcast %115 : f32 to vector<1x256xf32>
    %117 = arith.mulf %45, %116 : vector<1x256xf32>
    %118 = arith.addf %114, %117 : vector<1x256xf32>
    %c2_48 = arith.constant 2 : index
    %c3_49 = arith.constant 3 : index
    %119 = memref.load %arg4[%c2_48, %c3_49] : memref<4x4xf32, #tpu.memory_space<smem>>
    %120 = vector.broadcast %119 : f32 to vector<1x256xf32>
    %121 = arith.mulf %48, %120 : vector<1x256xf32>
    %122 = arith.addf %118, %121 : vector<1x256xf32>
    %c3_50 = arith.constant 3 : index
    %c3_51 = arith.constant 3 : index
    %123 = memref.load %arg4[%c3_50, %c3_51] : memref<4x4xf32, #tpu.memory_space<smem>>
    %124 = vector.broadcast %123 : f32 to vector<1x256xf32>
    %125 = arith.mulf %51, %124 : vector<1x256xf32>
    %126 = arith.addf %122, %125 : vector<1x256xf32>
    %c0_52 = arith.constant 0 : index
    %c3_53 = arith.constant 3 : index
    %127 = memref.load %arg5[%c0_52, %c3_53] : memref<1x4xf32, #tpu.memory_space<smem>>
    %128 = vector.broadcast %127 : f32 to vector<1x256xf32>
    %129 = arith.addf %126, %128 : vector<1x256xf32>
    %cst_54 = arith.constant 1.000000e+00 : f32
    %130 = vector.broadcast %cst_54 : f32 to vector<1x256xf32>
    %131 = arith.mulf %129, %130 : vector<1x256xf32>
    %132 = arith.maximumf %71, %91 : vector<1x256xf32>
    %133 = arith.maximumf %132, %111 : vector<1x256xf32>
    %134 = arith.maximumf %133, %131 : vector<1x256xf32>
    %135 = arith.subf %71, %134 : vector<1x256xf32>
    %136 = math.exp %135 : vector<1x256xf32>
    %137 = arith.subf %91, %134 : vector<1x256xf32>
    %138 = math.exp %137 : vector<1x256xf32>
    %139 = arith.subf %111, %134 : vector<1x256xf32>
    %140 = math.exp %139 : vector<1x256xf32>
    %141 = arith.subf %131, %134 : vector<1x256xf32>
    %142 = math.exp %141 : vector<1x256xf32>
    %143 = arith.addf %136, %138 : vector<1x256xf32>
    %144 = arith.addf %143, %140 : vector<1x256xf32>
    %145 = arith.addf %144, %142 : vector<1x256xf32>
    %146 = tpu.reciprocal %145 {approx = true} : vector<1x256xf32> -> vector<1x256xf32>
    %147 = arith.mulf %136, %146 : vector<1x256xf32>
    %148 = arith.subf %147, %8 : vector<1x256xf32>
    %149 = arith.mulf %138, %146 : vector<1x256xf32>
    %150 = arith.subf %149, %9 : vector<1x256xf32>
    %151 = arith.mulf %140, %146 : vector<1x256xf32>
    %152 = arith.subf %151, %10 : vector<1x256xf32>
    %153 = arith.mulf %142, %146 : vector<1x256xf32>
    %154 = arith.subf %153, %11 : vector<1x256xf32>
    %c0_55 = arith.constant 0 : index
    %c0_56 = arith.constant 0 : index
    %155 = memref.load %arg4[%c0_55, %c0_56] : memref<4x4xf32, #tpu.memory_space<smem>>
    %156 = vector.broadcast %155 : f32 to vector<1x256xf32>
    %157 = arith.mulf %148, %156 : vector<1x256xf32>
    %c0_57 = arith.constant 0 : index
    %c1_58 = arith.constant 1 : index
    %158 = memref.load %arg4[%c0_57, %c1_58] : memref<4x4xf32, #tpu.memory_space<smem>>
    %159 = vector.broadcast %158 : f32 to vector<1x256xf32>
    %160 = arith.mulf %150, %159 : vector<1x256xf32>
    %161 = arith.addf %157, %160 : vector<1x256xf32>
    %c0_59 = arith.constant 0 : index
    %c2_60 = arith.constant 2 : index
    %162 = memref.load %arg4[%c0_59, %c2_60] : memref<4x4xf32, #tpu.memory_space<smem>>
    %163 = vector.broadcast %162 : f32 to vector<1x256xf32>
    %164 = arith.mulf %152, %163 : vector<1x256xf32>
    %165 = arith.addf %161, %164 : vector<1x256xf32>
    %c0_61 = arith.constant 0 : index
    %c3_62 = arith.constant 3 : index
    %166 = memref.load %arg4[%c0_61, %c3_62] : memref<4x4xf32, #tpu.memory_space<smem>>
    %167 = vector.broadcast %166 : f32 to vector<1x256xf32>
    %168 = arith.mulf %154, %167 : vector<1x256xf32>
    %169 = arith.addf %165, %168 : vector<1x256xf32>
    %c1_63 = arith.constant 1 : index
    %c0_64 = arith.constant 0 : index
    %170 = memref.load %arg4[%c1_63, %c0_64] : memref<4x4xf32, #tpu.memory_space<smem>>
    %171 = vector.broadcast %170 : f32 to vector<1x256xf32>
    %172 = arith.mulf %148, %171 : vector<1x256xf32>
    %c1_65 = arith.constant 1 : index
    %c1_66 = arith.constant 1 : index
    %173 = memref.load %arg4[%c1_65, %c1_66] : memref<4x4xf32, #tpu.memory_space<smem>>
    %174 = vector.broadcast %173 : f32 to vector<1x256xf32>
    %175 = arith.mulf %150, %174 : vector<1x256xf32>
    %176 = arith.addf %172, %175 : vector<1x256xf32>
    %c1_67 = arith.constant 1 : index
    %c2_68 = arith.constant 2 : index
    %177 = memref.load %arg4[%c1_67, %c2_68] : memref<4x4xf32, #tpu.memory_space<smem>>
    %178 = vector.broadcast %177 : f32 to vector<1x256xf32>
    %179 = arith.mulf %152, %178 : vector<1x256xf32>
    %180 = arith.addf %176, %179 : vector<1x256xf32>
    %c1_69 = arith.constant 1 : index
    %c3_70 = arith.constant 3 : index
    %181 = memref.load %arg4[%c1_69, %c3_70] : memref<4x4xf32, #tpu.memory_space<smem>>
    %182 = vector.broadcast %181 : f32 to vector<1x256xf32>
    %183 = arith.mulf %154, %182 : vector<1x256xf32>
    %184 = arith.addf %180, %183 : vector<1x256xf32>
    %c2_71 = arith.constant 2 : index
    %c0_72 = arith.constant 0 : index
    %185 = memref.load %arg4[%c2_71, %c0_72] : memref<4x4xf32, #tpu.memory_space<smem>>
    %186 = vector.broadcast %185 : f32 to vector<1x256xf32>
    %187 = arith.mulf %148, %186 : vector<1x256xf32>
    %c2_73 = arith.constant 2 : index
    %c1_74 = arith.constant 1 : index
    %188 = memref.load %arg4[%c2_73, %c1_74] : memref<4x4xf32, #tpu.memory_space<smem>>
    %189 = vector.broadcast %188 : f32 to vector<1x256xf32>
    %190 = arith.mulf %150, %189 : vector<1x256xf32>
    %191 = arith.addf %187, %190 : vector<1x256xf32>
    %c2_75 = arith.constant 2 : index
    %c2_76 = arith.constant 2 : index
    %192 = memref.load %arg4[%c2_75, %c2_76] : memref<4x4xf32, #tpu.memory_space<smem>>
    %193 = vector.broadcast %192 : f32 to vector<1x256xf32>
    %194 = arith.mulf %152, %193 : vector<1x256xf32>
    %195 = arith.addf %191, %194 : vector<1x256xf32>
    %c2_77 = arith.constant 2 : index
    %c3_78 = arith.constant 3 : index
    %196 = memref.load %arg4[%c2_77, %c3_78] : memref<4x4xf32, #tpu.memory_space<smem>>
    %197 = vector.broadcast %196 : f32 to vector<1x256xf32>
    %198 = arith.mulf %154, %197 : vector<1x256xf32>
    %199 = arith.addf %195, %198 : vector<1x256xf32>
    %c3_79 = arith.constant 3 : index
    %c0_80 = arith.constant 0 : index
    %200 = memref.load %arg4[%c3_79, %c0_80] : memref<4x4xf32, #tpu.memory_space<smem>>
    %201 = vector.broadcast %200 : f32 to vector<1x256xf32>
    %202 = arith.mulf %148, %201 : vector<1x256xf32>
    %c3_81 = arith.constant 3 : index
    %c1_82 = arith.constant 1 : index
    %203 = memref.load %arg4[%c3_81, %c1_82] : memref<4x4xf32, #tpu.memory_space<smem>>
    %204 = vector.broadcast %203 : f32 to vector<1x256xf32>
    %205 = arith.mulf %150, %204 : vector<1x256xf32>
    %206 = arith.addf %202, %205 : vector<1x256xf32>
    %c3_83 = arith.constant 3 : index
    %c2_84 = arith.constant 2 : index
    %207 = memref.load %arg4[%c3_83, %c2_84] : memref<4x4xf32, #tpu.memory_space<smem>>
    %208 = vector.broadcast %207 : f32 to vector<1x256xf32>
    %209 = arith.mulf %152, %208 : vector<1x256xf32>
    %210 = arith.addf %206, %209 : vector<1x256xf32>
    %c3_85 = arith.constant 3 : index
    %c3_86 = arith.constant 3 : index
    %211 = memref.load %arg4[%c3_85, %c3_86] : memref<4x4xf32, #tpu.memory_space<smem>>
    %212 = vector.broadcast %211 : f32 to vector<1x256xf32>
    %213 = arith.mulf %154, %212 : vector<1x256xf32>
    %214 = arith.addf %210, %213 : vector<1x256xf32>
    %215 = arith.mulf %169, %169 : vector<1x256xf32>
    %216 = arith.mulf %184, %184 : vector<1x256xf32>
    %217 = arith.addf %215, %216 : vector<1x256xf32>
    %218 = arith.mulf %199, %199 : vector<1x256xf32>
    %219 = arith.addf %217, %218 : vector<1x256xf32>
    %220 = arith.mulf %214, %214 : vector<1x256xf32>
    %221 = arith.addf %219, %220 : vector<1x256xf32>
    %222 = vector.shape_cast %221 : vector<1x256xf32> to vector<1x1x256xf32>
    %cst_87 = arith.constant dense<0.000000e+00> : vector<1xf32>
    %223 = vector.multi_reduction <add>, %222, %cst_87 [1, 2] : vector<1x1x256xf32> to vector<1xf32>
    %224 = vector.shape_cast %223 : vector<1xf32> to vector<1x1x1xf32>
    %225 = vector.extract %224[0, 0, 0] : f32 from vector<1x1x1xf32>
    %226 = math.sqrt %225 : f32
    %cst_88 = arith.constant 9.99999993E-9 : f32
    %227 = arith.addf %226, %cst_88 : f32
    %cst_89 = arith.constant 1.000000e+00 : f32
    %228 = arith.divf %cst_89, %227 : f32
    %229 = vector.broadcast %228 : f32 to vector<1x256xf32>
    %230 = arith.mulf %169, %229 : vector<1x256xf32>
    %231 = vector.broadcast %228 : f32 to vector<1x256xf32>
    %232 = arith.mulf %184, %231 : vector<1x256xf32>
    %233 = vector.broadcast %228 : f32 to vector<1x256xf32>
    %234 = arith.mulf %199, %233 : vector<1x256xf32>
    %235 = vector.broadcast %228 : f32 to vector<1x256xf32>
    %236 = arith.mulf %214, %235 : vector<1x256xf32>
    %cst_90 = arith.constant 1.000000e+00 : f32
    %237 = vector.broadcast %cst_90 : f32 to vector<1x256xf32>
    %238 = arith.mulf %237, %230 : vector<1x256xf32>
    %239 = arith.addf %4, %238 : vector<1x256xf32>
    %cst_91 = arith.constant 1.000000e+00 : f32
    %240 = vector.broadcast %cst_91 : f32 to vector<1x256xf32>
    %241 = arith.mulf %240, %232 : vector<1x256xf32>
    %242 = arith.addf %5, %241 : vector<1x256xf32>
    %cst_92 = arith.constant 1.000000e+00 : f32
    %243 = vector.broadcast %cst_92 : f32 to vector<1x256xf32>
    %244 = arith.mulf %243, %234 : vector<1x256xf32>
    %245 = arith.addf %6, %244 : vector<1x256xf32>
    %cst_93 = arith.constant 1.000000e+00 : f32
    %246 = vector.broadcast %cst_93 : f32 to vector<1x256xf32>
    %247 = arith.mulf %246, %236 : vector<1x256xf32>
    %248 = arith.addf %7, %247 : vector<1x256xf32>
    %c0_94 = arith.constant 0 : index
    %c0_95 = arith.constant 0 : index
    %249 = memref.load %arg4[%c0_94, %c0_95] : memref<4x4xf32, #tpu.memory_space<smem>>
    %250 = vector.broadcast %249 : f32 to vector<1x256xf32>
    %251 = arith.mulf %239, %250 : vector<1x256xf32>
    %c1_96 = arith.constant 1 : index
    %c0_97 = arith.constant 0 : index
    %252 = memref.load %arg4[%c1_96, %c0_97] : memref<4x4xf32, #tpu.memory_space<smem>>
    %253 = vector.broadcast %252 : f32 to vector<1x256xf32>
    %254 = arith.mulf %242, %253 : vector<1x256xf32>
    %255 = arith.addf %251, %254 : vector<1x256xf32>
    %c2_98 = arith.constant 2 : index
    %c0_99 = arith.constant 0 : index
    %256 = memref.load %arg4[%c2_98, %c0_99] : memref<4x4xf32, #tpu.memory_space<smem>>
    %257 = vector.broadcast %256 : f32 to vector<1x256xf32>
    %258 = arith.mulf %245, %257 : vector<1x256xf32>
    %259 = arith.addf %255, %258 : vector<1x256xf32>
    %c3_100 = arith.constant 3 : index
    %c0_101 = arith.constant 0 : index
    %260 = memref.load %arg4[%c3_100, %c0_101] : memref<4x4xf32, #tpu.memory_space<smem>>
    %261 = vector.broadcast %260 : f32 to vector<1x256xf32>
    %262 = arith.mulf %248, %261 : vector<1x256xf32>
    %263 = arith.addf %259, %262 : vector<1x256xf32>
    %c0_102 = arith.constant 0 : index
    %c0_103 = arith.constant 0 : index
    %264 = memref.load %arg5[%c0_102, %c0_103] : memref<1x4xf32, #tpu.memory_space<smem>>
    %265 = vector.broadcast %264 : f32 to vector<1x256xf32>
    %266 = arith.addf %263, %265 : vector<1x256xf32>
    %cst_104 = arith.constant 1.000000e+00 : f32
    %267 = vector.broadcast %cst_104 : f32 to vector<1x256xf32>
    %268 = arith.mulf %266, %267 : vector<1x256xf32>
    %c0_105 = arith.constant 0 : index
    %c1_106 = arith.constant 1 : index
    %269 = memref.load %arg4[%c0_105, %c1_106] : memref<4x4xf32, #tpu.memory_space<smem>>
    %270 = vector.broadcast %269 : f32 to vector<1x256xf32>
    %271 = arith.mulf %239, %270 : vector<1x256xf32>
    %c1_107 = arith.constant 1 : index
    %c1_108 = arith.constant 1 : index
    %272 = memref.load %arg4[%c1_107, %c1_108] : memref<4x4xf32, #tpu.memory_space<smem>>
    %273 = vector.broadcast %272 : f32 to vector<1x256xf32>
    %274 = arith.mulf %242, %273 : vector<1x256xf32>
    %275 = arith.addf %271, %274 : vector<1x256xf32>
    %c2_109 = arith.constant 2 : index
    %c1_110 = arith.constant 1 : index
    %276 = memref.load %arg4[%c2_109, %c1_110] : memref<4x4xf32, #tpu.memory_space<smem>>
    %277 = vector.broadcast %276 : f32 to vector<1x256xf32>
    %278 = arith.mulf %245, %277 : vector<1x256xf32>
    %279 = arith.addf %275, %278 : vector<1x256xf32>
    %c3_111 = arith.constant 3 : index
    %c1_112 = arith.constant 1 : index
    %280 = memref.load %arg4[%c3_111, %c1_112] : memref<4x4xf32, #tpu.memory_space<smem>>
    %281 = vector.broadcast %280 : f32 to vector<1x256xf32>
    %282 = arith.mulf %248, %281 : vector<1x256xf32>
    %283 = arith.addf %279, %282 : vector<1x256xf32>
    %c0_113 = arith.constant 0 : index
    %c1_114 = arith.constant 1 : index
    %284 = memref.load %arg5[%c0_113, %c1_114] : memref<1x4xf32, #tpu.memory_space<smem>>
    %285 = vector.broadcast %284 : f32 to vector<1x256xf32>
    %286 = arith.addf %283, %285 : vector<1x256xf32>
    %cst_115 = arith.constant 1.000000e+00 : f32
    %287 = vector.broadcast %cst_115 : f32 to vector<1x256xf32>
    %288 = arith.mulf %286, %287 : vector<1x256xf32>
    %c0_116 = arith.constant 0 : index
    %c2_117 = arith.constant 2 : index
    %289 = memref.load %arg4[%c0_116, %c2_117] : memref<4x4xf32, #tpu.memory_space<smem>>
    %290 = vector.broadcast %289 : f32 to vector<1x256xf32>
    %291 = arith.mulf %239, %290 : vector<1x256xf32>
    %c1_118 = arith.constant 1 : index
    %c2_119 = arith.constant 2 : index
    %292 = memref.load %arg4[%c1_118, %c2_119] : memref<4x4xf32, #tpu.memory_space<smem>>
    %293 = vector.broadcast %292 : f32 to vector<1x256xf32>
    %294 = arith.mulf %242, %293 : vector<1x256xf32>
    %295 = arith.addf %291, %294 : vector<1x256xf32>
    %c2_120 = arith.constant 2 : index
    %c2_121 = arith.constant 2 : index
    %296 = memref.load %arg4[%c2_120, %c2_121] : memref<4x4xf32, #tpu.memory_space<smem>>
    %297 = vector.broadcast %296 : f32 to vector<1x256xf32>
    %298 = arith.mulf %245, %297 : vector<1x256xf32>
    %299 = arith.addf %295, %298 : vector<1x256xf32>
    %c3_122 = arith.constant 3 : index
    %c2_123 = arith.constant 2 : index
    %300 = memref.load %arg4[%c3_122, %c2_123] : memref<4x4xf32, #tpu.memory_space<smem>>
    %301 = vector.broadcast %300 : f32 to vector<1x256xf32>
    %302 = arith.mulf %248, %301 : vector<1x256xf32>
    %303 = arith.addf %299, %302 : vector<1x256xf32>
    %c0_124 = arith.constant 0 : index
    %c2_125 = arith.constant 2 : index
    %304 = memref.load %arg5[%c0_124, %c2_125] : memref<1x4xf32, #tpu.memory_space<smem>>
    %305 = vector.broadcast %304 : f32 to vector<1x256xf32>
    %306 = arith.addf %303, %305 : vector<1x256xf32>
    %cst_126 = arith.constant 1.000000e+00 : f32
    %307 = vector.broadcast %cst_126 : f32 to vector<1x256xf32>
    %308 = arith.mulf %306, %307 : vector<1x256xf32>
    %c0_127 = arith.constant 0 : index
    %c3_128 = arith.constant 3 : index
    %309 = memref.load %arg4[%c0_127, %c3_128] : memref<4x4xf32, #tpu.memory_space<smem>>
    %310 = vector.broadcast %309 : f32 to vector<1x256xf32>
    %311 = arith.mulf %239, %310 : vector<1x256xf32>
    %c1_129 = arith.constant 1 : index
    %c3_130 = arith.constant 3 : index
    %312 = memref.load %arg4[%c1_129, %c3_130] : memref<4x4xf32, #tpu.memory_space<smem>>
    %313 = vector.broadcast %312 : f32 to vector<1x256xf32>
    %314 = arith.mulf %242, %313 : vector<1x256xf32>
    %315 = arith.addf %311, %314 : vector<1x256xf32>
    %c2_131 = arith.constant 2 : index
    %c3_132 = arith.constant 3 : index
    %316 = memref.load %arg4[%c2_131, %c3_132] : memref<4x4xf32, #tpu.memory_space<smem>>
    %317 = vector.broadcast %316 : f32 to vector<1x256xf32>
    %318 = arith.mulf %245, %317 : vector<1x256xf32>
    %319 = arith.addf %315, %318 : vector<1x256xf32>
    %c3_133 = arith.constant 3 : index
    %c3_134 = arith.constant 3 : index
    %320 = memref.load %arg4[%c3_133, %c3_134] : memref<4x4xf32, #tpu.memory_space<smem>>
    %321 = vector.broadcast %320 : f32 to vector<1x256xf32>
    %322 = arith.mulf %248, %321 : vector<1x256xf32>
    %323 = arith.addf %319, %322 : vector<1x256xf32>
    %c0_135 = arith.constant 0 : index
    %c3_136 = arith.constant 3 : index
    %324 = memref.load %arg5[%c0_135, %c3_136] : memref<1x4xf32, #tpu.memory_space<smem>>
    %325 = vector.broadcast %324 : f32 to vector<1x256xf32>
    %326 = arith.addf %323, %325 : vector<1x256xf32>
    %cst_137 = arith.constant 1.000000e+00 : f32
    %327 = vector.broadcast %cst_137 : f32 to vector<1x256xf32>
    %328 = arith.mulf %326, %327 : vector<1x256xf32>
    %329 = arith.maximumf %268, %288 : vector<1x256xf32>
    %330 = arith.maximumf %329, %308 : vector<1x256xf32>
    %331 = arith.maximumf %330, %328 : vector<1x256xf32>
    %332 = arith.subf %268, %331 : vector<1x256xf32>
    %333 = math.exp %332 : vector<1x256xf32>
    %334 = arith.subf %288, %331 : vector<1x256xf32>
    %335 = math.exp %334 : vector<1x256xf32>
    %336 = arith.subf %308, %331 : vector<1x256xf32>
    %337 = math.exp %336 : vector<1x256xf32>
    %338 = arith.subf %328, %331 : vector<1x256xf32>
    %339 = math.exp %338 : vector<1x256xf32>
    %340 = arith.addf %333, %335 : vector<1x256xf32>
    %341 = arith.addf %340, %337 : vector<1x256xf32>
    %342 = arith.addf %341, %339 : vector<1x256xf32>
    %343 = math.log %342 : vector<1x256xf32>
    %cst_138 = arith.constant 1.000000e-16 : f32
    %344 = vector.broadcast %cst_138 : f32 to vector<1x256xf32>
    %345 = arith.addf %8, %344 : vector<1x256xf32>
    %346 = math.log %345 : vector<1x256xf32>
    %347 = arith.subf %268, %331 : vector<1x256xf32>
    %348 = arith.subf %347, %343 : vector<1x256xf32>
    %349 = arith.subf %346, %348 : vector<1x256xf32>
    %350 = arith.mulf %8, %349 : vector<1x256xf32>
    %cst_139 = arith.constant 1.000000e-16 : f32
    %351 = vector.broadcast %cst_139 : f32 to vector<1x256xf32>
    %352 = arith.addf %9, %351 : vector<1x256xf32>
    %353 = math.log %352 : vector<1x256xf32>
    %354 = arith.subf %288, %331 : vector<1x256xf32>
    %355 = arith.subf %354, %343 : vector<1x256xf32>
    %356 = arith.subf %353, %355 : vector<1x256xf32>
    %357 = arith.mulf %9, %356 : vector<1x256xf32>
    %358 = arith.addf %350, %357 : vector<1x256xf32>
    %cst_140 = arith.constant 1.000000e-16 : f32
    %359 = vector.broadcast %cst_140 : f32 to vector<1x256xf32>
    %360 = arith.addf %10, %359 : vector<1x256xf32>
    %361 = math.log %360 : vector<1x256xf32>
    %362 = arith.subf %308, %331 : vector<1x256xf32>
    %363 = arith.subf %362, %343 : vector<1x256xf32>
    %364 = arith.subf %361, %363 : vector<1x256xf32>
    %365 = arith.mulf %10, %364 : vector<1x256xf32>
    %366 = arith.addf %358, %365 : vector<1x256xf32>
    %cst_141 = arith.constant 1.000000e-16 : f32
    %367 = vector.broadcast %cst_141 : f32 to vector<1x256xf32>
    %368 = arith.addf %11, %367 : vector<1x256xf32>
    %369 = math.log %368 : vector<1x256xf32>
    %370 = arith.subf %328, %331 : vector<1x256xf32>
    %371 = arith.subf %370, %343 : vector<1x256xf32>
    %372 = arith.subf %369, %371 : vector<1x256xf32>
    %373 = arith.mulf %11, %372 : vector<1x256xf32>
    %374 = arith.addf %366, %373 : vector<1x256xf32>
    %375 = vector.shape_cast %374 : vector<1x256xf32> to vector<1x1x256xf32>
    %cst_142 = arith.constant dense<0.000000e+00> : vector<1xf32>
    %376 = vector.multi_reduction <add>, %375, %cst_142 [1, 2] : vector<1x1x256xf32> to vector<1xf32>
    %377 = vector.shape_cast %376 : vector<1xf32> to vector<1x1x1xf32>
    %378 = vector.extract %377[0, 0, 0] : f32 from vector<1x1x1xf32>
    %379 = vector.broadcast %378 : f32 to vector<1x128xf32>
    %c0_143 = arith.constant 0 : index
    %c0_144 = arith.constant 0 : index
    %c0_145 = arith.constant 0 : index
    %380 = vector.load %arg6[%c0_143, %c0_144, %c0_145] : memref<1x1x128xf32, #tpu.memory_space<vmem>>, vector<1x1x128xf32>
    %381 = vector.shape_cast %380 : vector<1x1x128xf32> to vector<1x128xf32>
    %382 = vector.shape_cast %379 : vector<1x128xf32> to vector<1x1x128xf32>
    tpu.vector_store %arg6[%c0_143, %c0_144, %c0_145], %382 {strides = array<i32>} : memref<1x1x128xf32, #tpu.memory_space<vmem>>, vector<1x1x128xf32>,
    return
  }
  func.func @transform_0(%arg0: i32) -> (i32, i32, i32) {
    %c0_i32 = arith.constant 0 : i32
    %c0_i32_0 = arith.constant 0 : i32
    %c0_i32_1 = arith.constant 0 : i32
    return %arg0, %c0_i32, %c0_i32_0 : i32, i32, i32
  }
  func.func @transform_1(%arg0: i32) -> (i32, i32, i32) {
    %c0_i32 = arith.constant 0 : i32
    %c0_i32_0 = arith.constant 0 : i32
    %c0_i32_1 = arith.constant 0 : i32
    return %arg0, %c0_i32, %c0_i32_0 : i32, i32, i32
  }
  func.func @transform_2(%arg0: i32) -> (i32, i32, i32) {
    %c0_i32 = arith.constant 0 : i32
    %c0_i32_0 = arith.constant 0 : i32
    %c0_i32_1 = arith.constant 0 : i32
    return %arg0, %c0_i32, %c0_i32_0 : i32, i32, i32
  }
  func.func @transform_3(%arg0: i32) -> (i32, i32) {
    %c0_i32 = arith.constant 0 : i32
    %c0_i32_0 = arith.constant 0 : i32
    %c0_i32_1 = arith.constant 0 : i32
    return %c0_i32, %c0_i32_0 : i32, i32
  }
  func.func @transform_4(%arg0: i32) -> (i32, i32) {
    %c0_i32 = arith.constant 0 : i32
    %c0_i32_0 = arith.constant 0 : i32
    %c0_i32_1 = arith.constant 0 : i32
    return %c0_i32, %c0_i32_0 : i32, i32
  }
  func.func @transform_5(%arg0: i32) -> (i32, i32, i32) {
    %c0_i32 = arith.constant 0 : i32
    %c0_i32_0 = arith.constant 0 : i32
    %c0_i32_1 = arith.constant 0 : i32
    return %arg0, %c0_i32, %c0_i32_0 : i32, i32, i32
  }
}

</mosaic_0001>

<llo_original>
// kernel: tpu_custom_call.1
$region0: #{tpu_custom_call.1}
  #allocation0 [shape = 'u32[]', space=smem, size = 0x4, offset = 0x4, fixed_abs, tag = 'smem constant byte address 0x4 - core index']
  #allocation1 [shape = 'u32[72,128]{1,0:T(1,128)}', space=vmem, size = 0x9000, scoped, tag = 'internal scratch']
  %s0 = inlined_call_operand.hbm [shape: f32[2,4,256], index: 0, kind: input, shape index: {}]
  %s1 = inlined_call_operand.hbm [shape: f32[2,4,256], index: 1, kind: input, shape index: {}]
  %s2 = inlined_call_operand.hbm [shape: f32[2,4,256], index: 2, kind: input, shape index: {}]
  %s3 = inlined_call_operand.hbm [shape: f32[4,4], index: 3, kind: input, shape index: {}]
  %s4 = inlined_call_operand.vmem [shape: f32[1,4], index: 4, kind: input, shape index: {}]
  %s5 = inlined_call_operand.hbm [shape: f32[2,1,128], index: 5, kind: output, shape index: {}]
  %s6 = sld [smem:[#allocation0]]
  $region73: #{tpu_custom_call.1} parent=0
    _
  %s8 = ssub.s32 1, %s6
  %s9 = scalar_select 0, %s8, %s6
  $region1: #{tpu_custom_call.1} parent=0
    #allocation2 [shape = 'u8[8192]{0}', space=vmem, size = 0x2000, scoped, tag = 'input window, operand 0']
    #allocation3 [shape = 's32[2]{0}', space=sflag, size = 0x8, scoped, tag = 'scoped memory for tpu_custom_call.1']
    #allocation4 [shape = 's32[2]{0}', space=sflag, size = 0x8, scoped, tag = 'scoped memory for tpu_custom_call.1']
    #allocation5 [shape = 's32[2]{0}', space=sflag, size = 0x8, scoped, tag = 'scoped memory for tpu_custom_call.1']
    #allocation6 [shape = 's32[2]{0}', space=sflag, size = 0x8, scoped, tag = 'scoped memory for tpu_custom_call.1']
    #allocation7 [shape = 'u8[8192]{0}', space=vmem, size = 0x2000, scoped, tag = 'input window, operand 1']
    #allocation8 [shape = 's32[2]{0}', space=sflag, size = 0x8, scoped, tag = 'scoped memory for tpu_custom_call.1']
    #allocation9 [shape = 'u8[8192]{0}', space=vmem, size = 0x2000, scoped, tag = 'input window, operand 2']
    #allocation10 [shape = 'u8[2048]{0}', space=smem, size = 0x800, scoped, tag = 'input window, operand 3, single buffered']
    #allocation11 [shape = 'u8[512]{0}', space=smem, size = 0x200, scoped, tag = 'input window, operand 4, single buffered']
    #allocation12 [shape = 'u8[1024]{0}', space=vmem, size = 0x400, scoped, tag = 'output window, operand 0']
    %10 = vsyncpa [#allocation3], 0
    %s11 = scalar_lea.sflag [#allocation3], 1
    %12 = vsyncpa %s11, 0
    %13 = vsyncpa [#allocation8], 0
    %s14 = scalar_lea.sflag [#allocation8], 1
    %15 = vsyncpa %s14, 0
    %16 = vsyncpa [#allocation5], 0
    %17 = vsyncpa [#allocation6], 0
    %18 = vsyncpa [#allocation4], 0
    %s19 = scalar_lea.sflag [#allocation4], 1
    %20 = vsyncpa %s19, 0
    loop: start=0, step=1, limit=4
    $region2: #{tpu_custom_call.1} parent=1 // loop_pre_header
      _
    $region3: #{tpu_custom_call.1} parent=1 // loop_header
      %s22 = sphi 0, %s26
      %p23 = scmp.ge.s32.totalorder %s22, 4
      %s32 = sphi 0, %s34
      %s35 = sphi 0, %s32
      %s36 = sphi 0, %s35
      %s52 = sphi 0, %s36
      %s58 = sphi 0, %s60
      %s61 = sphi 0, %s58
      %s62 = sphi 0, %s61
      %s78 = sphi 0, %s62
      %s84 = sphi 0, %s86
      %s87 = sphi 0, %s84
      %s88 = sphi 0, %s87
      %s104 = sphi 0, %s88
      %s108 = sphi 0, %s108
      %s110 = sphi 0, %s108
      %s111 = sphi 0, %s110
      %s125 = sphi 0, %s111
      %s129 = sphi 0, %s129
      %s131 = sphi 0, %s129
      %s132 = sphi 0, %s131
      %s146 = sphi 0, %s132
      %s152 = sphi 0, %s154
      %s155 = sphi 0, %s152
      %s156 = sphi 0, %s155
      %s172 = sphi 0, %s156
    $region4: #{tpu_custom_call.1} parent=1 // loop_header_branch
      %25 = sbr.rel (%p23) target = $region8
    $region5: #{tpu_custom_call.1} parent=1 // loop_body
      %s27 = ssub.s32 %s22, 1
      %s28 = ssub.s32 %s22, 2
      %s29 = sadd.s32 %s22, 1
      %s30 = ssub.s32 %s22, %s29
      %p31 = scmp.eq.s32.totalorder %s30, 0
      %s33 = sadd.s32 %s32, 1
      %s34 = scalar_select %p31, %s32, %s33
      %p37 = pneg %p31
      %p38 = scmp.eq.s32.totalorder %s22, 1
      %p39 = por %p37, %p38
      %p40 = scmp.ne.s32.totalorder %s32, %s35
      %p41 = scmp.eq.s32.totalorder %s22, 0
      %p42 = por %p40, %p41
      %p43 = scmp.ne.s32.totalorder %s32, %s35
      %p44 = scmp.eq.s32.totalorder %s27, 1
      %p45 = por %p43, %p44
      %p46 = scmp.ne.s32.totalorder %s35, %s36
      %p47 = scmp.eq.s32.totalorder %s27, 0
      %p48 = por %p46, %p47
      %p49 = scmp.ne.s32.totalorder %s35, %s36
      %p50 = scmp.eq.s32.totalorder %s28, 1
      %p51 = por %p49, %p50
      %p53 = scmp.ne.s32.totalorder %s36, %s52
      %p54 = scmp.eq.s32.totalorder %s28, 0
      %p55 = por %p53, %p54
      %s56 = ssub.s32 %s22, %s29
      %p57 = scmp.eq.s32.totalorder %s56, 0
      %s59 = sadd.s32 %s58, 1
      %s60 = scalar_select %p57, %s58, %s59
      %p63 = pneg %p57
      %p64 = scmp.eq.s32.totalorder %s22, 1
      %p65 = por %p63, %p64
      %p66 = scmp.ne.s32.totalorder %s58, %s61
      %p67 = scmp.eq.s32.totalorder %s22, 0
      %p68 = por %p66, %p67
      %p69 = scmp.ne.s32.totalorder %s58, %s61
      %p70 = scmp.eq.s32.totalorder %s27, 1
      %p71 = por %p69, %p70
      %p72 = scmp.ne.s32.totalorder %s61, %s62
      %p73 = scmp.eq.s32.totalorder %s27, 0
      %p74 = por %p72, %p73
      %p75 = scmp.ne.s32.totalorder %s61, %s62
      %p76 = scmp.eq.s32.totalorder %s28, 1
      %p77 = por %p75, %p76
      %p79 = scmp.ne.s32.totalorder %s62, %s78
      %p80 = scmp.eq.s32.totalorder %s28, 0
      %p81 = por %p79, %p80
      %s82 = ssub.s32 %s22, %s29
      %p83 = scmp.eq.s32.totalorder %s82, 0
      %s85 = sadd.s32 %s84, 1
      %s86 = scalar_select %p83, %s84, %s85
      %p89 = pneg %p83
      %p90 = scmp.eq.s32.totalorder %s22, 1
      %p91 = por %p89, %p90
      %p92 = scmp.ne.s32.totalorder %s84, %s87
      %p93 = scmp.eq.s32.totalorder %s22, 0
      %p94 = por %p92, %p93
      %p95 = scmp.ne.s32.totalorder %s84, %s87
      %p96 = scmp.eq.s32.totalorder %s27, 1
      %p97 = por %p95, %p96
      %p98 = scmp.ne.s32.totalorder %s87, %s88
      %p99 = scmp.eq.s32.totalorder %s27, 0
      %p100 = por %p98, %p99
      %p101 = scmp.ne.s32.totalorder %s87, %s88
      %p102 = scmp.eq.s32.totalorder %s28, 1
      %p103 = por %p101, %p102
      %p105 = scmp.ne.s32.totalorder %s88, %s104
      %p106 = scmp.eq.s32.totalorder %s28, 0
      %p107 = por %p105, %p106
      %s109 = sadd.s32 %s108, 1
      %p112 = scmp.eq.s32.totalorder %s22, 1
      %p113 = scmp.ne.s32.totalorder %s108, %s110
      %p114 = scmp.eq.s32.totalorder %s22, 0
      %p115 = por %p113, %p114
      %p116 = scmp.ne.s32.totalorder %s108, %s110
      %p117 = scmp.eq.s32.totalorder %s27, 1
      %p118 = por %p116, %p117
      %p119 = scmp.ne.s32.totalorder %s110, %s111
      %p120 = scmp.eq.s32.totalorder %s27, 0
      %p121 = por %p119, %p120
      %p122 = scmp.ne.s32.totalorder %s110, %s111
      %p123 = scmp.eq.s32.totalorder %s28, 1
      %p124 = por %p122, %p123
      %p126 = scmp.ne.s32.totalorder %s111, %s125
      %p127 = scmp.eq.s32.totalorder %s28, 0
      %p128 = por %p126, %p127
      %s130 = sadd.s32 %s129, 1
      %p133 = scmp.eq.s32.totalorder %s22, 1
      %p134 = scmp.ne.s32.totalorder %s129, %s131
      %p135 = scmp.eq.s32.totalorder %s22, 0
      %p136 = por %p134, %p135
      %p137 = scmp.ne.s32.totalorder %s129, %s131
      %p138 = scmp.eq.s32.totalorder %s27, 1
      %p139 = por %p137, %p138
      %p140 = scmp.ne.s32.totalorder %s131, %s132
      %p141 = scmp.eq.s32.totalorder %s27, 0
      %p142 = por %p140, %p141
      %p143 = scmp.ne.s32.totalorder %s131, %s132
      %p144 = scmp.eq.s32.totalorder %s28, 1
      %p145 = por %p143, %p144
      %p147 = scmp.ne.s32.totalorder %s132, %s146
      %p148 = scmp.eq.s32.totalorder %s28, 0
      %p149 = por %p147, %p148
      %s150 = ssub.s32 %s22, %s29
      %p151 = scmp.eq.s32.totalorder %s150, 0
      %s153 = sadd.s32 %s152, 1
      %s154 = scalar_select %p151, %s152, %s153
      %p157 = pneg %p151
      %p158 = scmp.eq.s32.totalorder %s22, 1
      %p159 = por %p157, %p158
      %p160 = scmp.ne.s32.totalorder %s152, %s155
      %p161 = scmp.eq.s32.totalorder %s22, 0
      %p162 = por %p160, %p161
      %p163 = scmp.ne.s32.totalorder %s152, %s155
      %p164 = scmp.eq.s32.totalorder %s27, 1
      %p165 = por %p163, %p164
      %p166 = scmp.ne.s32.totalorder %s155, %s156
      %p167 = scmp.eq.s32.totalorder %s27, 0
      %p168 = por %p166, %p167
      %p169 = scmp.ne.s32.totalorder %s155, %s156
      %p170 = scmp.eq.s32.totalorder %s28, 1
      %p171 = por %p169, %p170
      %p173 = scmp.ne.s32.totalorder %s156, %s172
      %p174 = scmp.eq.s32.totalorder %s28, 0
      %p175 = por %p173, %p174
      %p176 = scmp.le.s32.totalorder 1, %s22
      %p177 = scmp.lt.s32.totalorder %s22, 3
      %p178 = pnand %p176, %p177
      %p179 = pneg %p178
      // Predicated region
      $region9: #{tpu_custom_call.1} parent=5 // pred_check
        _
      $region10: #{tpu_custom_call.1} parent=5 // pred_check_branch
        %181 = sbr.rel (%p178) target = $region12
      $region11: #{tpu_custom_call.1} parent=5 // pred_region
        %s182 = ssub.s32 %s22, 1
        // Predicated region
        $region13: #{tpu_custom_call.1} parent=11 // pred_check
          %p183 = pneg %p121
        $region14: #{tpu_custom_call.1} parent=11 // pred_check_branch
          %185 = sbr.rel (%p183) target = $region16
        $region15: #{tpu_custom_call.1} parent=11 // pred_region
          %187 = vsyncadd [#allocation5], 0
          %s189 = sshll.u32 %s3, 4
          %s190 = int_to_ptr.hbm [resolvable:$true] %s189
          %192 = dma.hbm_to_smem %s190, 64, [#allocation10], [#allocation5]
        $region16: #{tpu_custom_call.1} parent=11 // pred_fallthru
          _
        // Predicated region
        $region17: #{tpu_custom_call.1} parent=11 // pred_check
          %p193 = pneg %p142
        $region18: #{tpu_custom_call.1} parent=11 // pred_check_branch
          %195 = sbr.rel (%p193) target = $region20
        $region19: #{tpu_custom_call.1} parent=11 // pred_region
          %197 = vsyncadd [#allocation6], 0
          %s199 = sshll.u32 %s4, 4
          %s200 = int_to_ptr.vmem [resolvable:$true] %s199
          %202 = dma.vmem_to_smem %s200, 16, [#allocation11], [#allocation6]
        $region20: #{tpu_custom_call.1} parent=11 // pred_fallthru
          _
      $region12: #{tpu_custom_call.1} parent=5 // pred_fallthru
        _
      %p203 = scmp.lt.s32.totalorder %s22, 2
      // Predicated region
      $region21: #{tpu_custom_call.1} parent=5 // pred_check
        %p204 = pneg %p203
      $region22: #{tpu_custom_call.1} parent=5 // pred_check_branch
        %206 = sbr.rel (%p204) target = $region24
      $region23: #{tpu_custom_call.1} parent=5 // pred_region
        // Predicated region
        $region25: #{tpu_custom_call.1} parent=23 // pred_check
          %p207 = pneg %p42
        $region26: #{tpu_custom_call.1} parent=23 // pred_check_branch
          %209 = sbr.rel (%p207) target = $region28
        $region27: #{tpu_custom_call.1} parent=23 // pred_region
          %s210 = sand.u32 %s32, 1
          %s211 = scalar_lea.sflag [#allocation3], %s210
          %s212 = sand.u32 %s32, 1
          %s213 = smul.addr %s212, 8
          %s214 = scalar_lea.vmem [#allocation2], %s213
          %216 = vsyncadd %s211, 0
          %s217 = smul.addr %s22, 2
          %s218 = smul.addr %s217, 4
          %s219 = scalar_lea.hbm %s0, %s218
          %s221 = sshll.u32 %s219, 4
          %s222 = int_to_ptr.hbm [resolvable:$true] %s221
          %s223 = sshll.u32 %s214, 4
          %s224 = int_to_ptr.vmem [resolvable:$true] %s223
          %226 = dma.hbm_to_vmem [thread:$0]  %s222, 128, %s224, %s211
        $region28: #{tpu_custom_call.1} parent=23 // pred_fallthru
          _
        // Predicated region
        $region29: #{tpu_custom_call.1} parent=23 // pred_check
          %p227 = pneg %p68
        $region30: #{tpu_custom_call.1} parent=23 // pred_check_branch
          %229 = sbr.rel (%p227) target = $region32
        $region31: #{tpu_custom_call.1} parent=23 // pred_region
          %s230 = sand.u32 %s22, 1
          %s231 = scalar_lea.sflag [#allocation8], %s230
          %s232 = sand.u32 %s58, 1
          %s233 = smul.addr %s232, 8
          %s234 = scalar_lea.vmem [#allocation7], %s233
          %236 = vsyncadd %s231, 0
          %s237 = smul.addr %s22, 2
          %s238 = smul.addr %s237, 4
          %s239 = scalar_lea.hbm %s1, %s238
          %s241 = sshll.u32 %s239, 4
          %s242 = int_to_ptr.hbm [resolvable:$true] %s241
          %s243 = sshll.u32 %s234, 4
          %s244 = int_to_ptr.vmem [resolvable:$true] %s243
          %246 = dma.hbm_to_vmem [thread:$0]  %s242, 128, %s244, %s231
        $region32: #{tpu_custom_call.1} parent=23 // pred_fallthru
          _
        // Predicated region
        $region33: #{tpu_custom_call.1} parent=23 // pred_check
          %p247 = pneg %p94
        $region34: #{tpu_custom_call.1} parent=23 // pred_check_branch
          %249 = sbr.rel (%p247) target = $region36
        $region35: #{tpu_custom_call.1} parent=23 // pred_region
          %s250 = sand.u32 %s22, 1
          %s251 = scalar_lea.sflag [#allocation8], %s250
          %s252 = sand.u32 %s84, 1
          %s253 = smul.addr %s252, 8
          %s254 = scalar_lea.vmem [#allocation9], %s253
          %256 = vsyncadd %s251, 0
          %s257 = smul.addr %s22, 2
          %s258 = smul.addr %s257, 4
          %s259 = scalar_lea.hbm %s2, %s258
          %s261 = sshll.u32 %s259, 4
          %s262 = int_to_ptr.hbm [resolvable:$true] %s261
          %s263 = sshll.u32 %s254, 4
          %s264 = int_to_ptr.vmem [resolvable:$true] %s263
          %266 = dma.hbm_to_vmem [thread:$0]  %s262, 128, %s264, %s251
        $region36: #{tpu_custom_call.1} parent=23 // pred_fallthru
          _
      $region24: #{tpu_custom_call.1} parent=5 // pred_fallthru
        _
      %p267 = scmp.le.s32.totalorder 1, %s22
      %p268 = scmp.lt.s32.totalorder %s22, 3
      %p269 = pnand %p267, %p268
      %p270 = pneg %p269
      // Predicated region
      $region37: #{tpu_custom_call.1} parent=5 // pred_check
        _
      $region38: #{tpu_custom_call.1} parent=5 // pred_check_branch
        %272 = sbr.rel (%p269) target = $region40
      $region39: #{tpu_custom_call.1} parent=5 // pred_region
        %s273 = ssub.s32 %s22, 1
        %s274 = sand.u32 %s35, 1
        %s275 = scalar_lea.sflag [#allocation3], %s274
        %s276 = sand.u32 %s35, 1
        %s277 = smul.addr %s276, 8
        %s278 = scalar_lea.vmem [#allocation2], %s277
        // Predicated region
        $region41: #{tpu_custom_call.1} parent=39 // pred_check
          %p279 = pneg %p48
        $region42: #{tpu_custom_call.1} parent=39 // pred_check_branch
          %281 = sbr.rel (%p279) target = $region44
        $region43: #{tpu_custom_call.1} parent=39 // pred_region
          %283 = dma.done %s275, 128
        $region44: #{tpu_custom_call.1} parent=39 // pred_fallthru
          _
        %s284 = sand.u32 %s27, 1
        %s285 = scalar_lea.sflag [#allocation8], %s284
        %s286 = sand.u32 %s61, 1
        %s287 = smul.addr %s286, 8
        %s288 = scalar_lea.vmem [#allocation7], %s287
        // Predicated region
        $region45: #{tpu_custom_call.1} parent=39 // pred_check
          %p289 = pneg %p74
        $region46: #{tpu_custom_call.1} parent=39 // pred_check_branch
          %291 = sbr.rel (%p289) target = $region48
        $region47: #{tpu_custom_call.1} parent=39 // pred_region
          %293 = dma.done %s285, 128
        $region48: #{tpu_custom_call.1} parent=39 // pred_fallthru
          _
        %s294 = sand.u32 %s27, 1
        %s295 = scalar_lea.sflag [#allocation8], %s294
        %s296 = sand.u32 %s87, 1
        %s297 = smul.addr %s296, 8
        %s298 = scalar_lea.vmem [#allocation9], %s297
        // Predicated region
        $region49: #{tpu_custom_call.1} parent=39 // pred_check
          %p299 = pneg %p100
        $region50: #{tpu_custom_call.1} parent=39 // pred_check_branch
          %301 = sbr.rel (%p299) target = $region52
        $region51: #{tpu_custom_call.1} parent=39 // pred_region
          %303 = dma.done %s295, 128
        $region52: #{tpu_custom_call.1} parent=39 // pred_fallthru
          _
        // Predicated region
        $region53: #{tpu_custom_call.1} parent=39 // pred_check
          %p304 = pneg %p121
        $region54: #{tpu_custom_call.1} parent=39 // pred_check_branch
          %306 = sbr.rel (%p304) target = $region56
        $region55: #{tpu_custom_call.1} parent=39 // pred_region
          %308 = dma.done [#allocation5], 64
        $region56: #{tpu_custom_call.1} parent=39 // pred_fallthru
          _
        // Predicated region
        $region57: #{tpu_custom_call.1} parent=39 // pred_check
          %p309 = pneg %p142
        $region58: #{tpu_custom_call.1} parent=39 // pred_check_branch
          %311 = sbr.rel (%p309) target = $region60
        $region59: #{tpu_custom_call.1} parent=39 // pred_region
          %313 = dma.done [#allocation6], 16
        $region60: #{tpu_custom_call.1} parent=39 // pred_fallthru
          _
        %314 = sfence
        %s315 = sand.u32 %s35, 1
        %s316 = scalar_lea.sflag [#allocation3], %s315
        %s317 = sand.u32 %s35, 1
        %s318 = smul.addr %s317, 8
        %s319 = scalar_lea.vmem [#allocation2], %s318
        %p320 = pneg %p48
        %p321 = pneg %p45
        %s322 = sand.u32 %s27, 1
        %s323 = scalar_lea.sflag [#allocation8], %s322
        %s324 = sand.u32 %s61, 1
        %s325 = smul.addr %s324, 8
        %s326 = scalar_lea.vmem [#allocation7], %s325
        %p327 = pneg %p74
        %p328 = pneg %p71
        %s329 = sand.u32 %s27, 1
        %s330 = scalar_lea.sflag [#allocation8], %s329
        %s331 = sand.u32 %s87, 1
        %s332 = smul.addr %s331, 8
        %s333 = scalar_lea.vmem [#allocation9], %s332
        %p334 = pneg %p100
        %p335 = pneg %p97
        %p336 = pneg %p121
        %p337 = pneg %p118
        %p338 = pneg %p142
        %p339 = pneg %p139
        %p340 = pneg %p168
        %p341 = pneg %p165
        %s342 = sand.u32 %s155, 1
        %s343 = scalar_lea.sflag [#allocation4], %s342
        %s344 = sand.u32 %s155, 1
        %s345 = scalar_lea.vmem [#allocation12], %s344
        %v346 = vld [vmem:[%s278] sm:$0xff]
        %v347 = vld [vmem:[%s298] sm:$0xff]
        %v348 = vld [vmem:[%s288] sm:$0xff]
        %v349 = vmul.f32 %v348, %v348
        %v351 = vrot.slane %v349, 5
        %v352 = vrot.slane %v351, 4
        %v354 = vadd.f32 %v349, %v352
        %v355 = vrot.slane %v349, 6
        %v356 = vrot.slane %v355, 4
        %v358 = vadd.f32 %v354, %v356
        %v359 = vrot.slane %v349, 7
        %v360 = vrot.slane %v359, 4
        %v362 = vadd.f32 %v358, %v360
        %v364 = vperm.slane %v362, 0
        %v365 = vperm.slane %v362, 4
        %vm368 = vcmask 1040384
        %v369 = vsel %vm368, %v364, 0.0
        %v370 = vsel %vm368, %v365, 0.0
        %v371 = vadd.f32 %v369, %v370
        %372 = vadd.xlane.f32.xlu0 %v371
        %v373 = vpop.xlane.xlu0 %372
        %v374 = vrot.slane %v373, 4
        %v375 = vadd.f32 %v373, %v374
        %v376 = vrot.slane %v375, 2
        %v377 = vadd.f32 %v375, %v376
        %v378 = vrot.slane %v377, 1
        %v379 = vadd.f32 %v377, %v378
        %s380 = vtos %v379
        %v381 = vstv %s380
        %v382 = vrsqrt.pop %v381
        %v383 = vmul.f32 %v382, %v381
        %v384 = vmul.f32 %v383, %v382
        %v385 = vmul.f32 0.5, %v384
        %v386 = vsub.f32 1.5, %v385
        %v387 = vmul.f32 %v382, %v386
        %v388 = vmul.f32 %v381, %v387
        %vm389 = vcmp.eq.f32.partialorder %v381, inf
        %v390 = vsel %vm389, %v381, %v388
        %vm391 = vcmp.eq.f32.partialorder %v381, 0.0
        %v392 = vand.u32 %v381, 2147483648
        %v393 = vsel %vm391, %v392, %v390
        %s394 = vtos %v393
        %s395 = sadd.f32 %s394, 1e-08
        %v396 = vstv %s395
        %v397 = vrcp.pop %v396
        %v398 = vmul.f32 %v396, %v397
        %v399 = vsub.f32 1.0, %v398
        %v400 = vmul.f32 %v397, %v399
        %v401 = vadd.f32 %v397, %v400
        %vm402 = vweird.f32 %v396
        %vm403 = vweird.f32 %v397
        %vm404 = vmor %vm402, %vm403
        %v405 = vsel %vm404, %v397, %v401
        %v406 = vand.u32 2147483647, %v396
        %vm407 = vcmp.eq.f32.partialorder %v406, 8.507059e+37
        %v408 = vand.u32 %v396, 2147483648
        %v409 = vor.u32 1.1754944e-38, %v408
        %v410 = vsel %vm407, %v409, %v405
        %s411 = vtos %v410
        %v412 = vstv %s411
        %v413 = vmul.f32 %v348, %v412
        %v414 = vmul.f32 %v413, 10.0
        %v415 = vadd.f32 %v346, %v414
        %s416 = sld [smem:[#allocation10]]
        %v417 = vstv %s416
        %v418 = vmul.f32 %v415, %v417
        %s419 = sld [smem:[#allocation10 + $0x80]]
        %v420 = vstv %s419
        %v421 = vmul.f32 %v415, %v420
        %v423 = vrot.slane %v421, 5
        %v424 = vrot.slane %v423, 4
        %v426 = vadd.f32 %v418, %v424
        %s427 = sld [smem:[#allocation10 + $0x100]]
        %v428 = vstv %s427
        %v429 = vmul.f32 %v415, %v428
        %v431 = vrot.slane %v429, 6
        %v432 = vrot.slane %v431, 4
        %v434 = vadd.f32 %v426, %v432
        %s435 = sld [smem:[#allocation10 + $0x180]]
        %v436 = vstv %s435
        %v437 = vmul.f32 %v415, %v436
        %v439 = vrot.slane %v437, 7
        %v440 = vrot.slane %v439, 4
        %v442 = vadd.f32 %v434, %v440
        %s443 = sld [smem:[#allocation11]]
        %v444 = vstv %s443
        %v445 = vadd.f32 %v442, %v444
        %s446 = sld [smem:[#allocation10 + $0x1]]
        %v447 = vstv %s446
        %v448 = vmul.f32 %v415, %v447
        %s449 = sld [smem:[#allocation10 + $0x81]]
        %v450 = vstv %s449
        %v451 = vmul.f32 %v415, %v450
        %v453 = vrot.slane %v451, 5
        %v454 = vrot.slane %v453, 4
        %v456 = vadd.f32 %v448, %v454
        %s457 = sld [smem:[#allocation10 + $0x101]]
        %v458 = vstv %s457
        %v459 = vmul.f32 %v415, %v458
        %v461 = vrot.slane %v459, 6
        %v462 = vrot.slane %v461, 4
        %v464 = vadd.f32 %v456, %v462
        %s465 = sld [smem:[#allocation10 + $0x181]]
        %v466 = vstv %s465
        %v467 = vmul.f32 %v415, %v466
        %v469 = vrot.slane %v467, 7
        %v470 = vrot.slane %v469, 4
        %v472 = vadd.f32 %v464, %v470
        %s473 = sld [smem:[#allocation11 + $0x1]]
        %v474 = vstv %s473
        %v475 = vadd.f32 %v472, %v474
        %s476 = sld [smem:[#allocation10 + $0x2]]
        %v477 = vstv %s476
        %v478 = vmul.f32 %v415, %v477
        %s479 = sld [smem:[#allocation10 + $0x82]]
        %v480 = vstv %s479
        %v481 = vmul.f32 %v415, %v480
        %v483 = vrot.slane %v481, 5
        %v484 = vrot.slane %v483, 4
        %v486 = vadd.f32 %v478, %v484
        %s487 = sld [smem:[#allocation10 + $0x102]]
        %v488 = vstv %s487
        %v489 = vmul.f32 %v415, %v488
        %v491 = vrot.slane %v489, 6
        %v492 = vrot.slane %v491, 4
        %v494 = vadd.f32 %v486, %v492
        %s495 = sld [smem:[#allocation10 + $0x182]]
        %v496 = vstv %s495
        %v497 = vmul.f32 %v415, %v496
        %v499 = vrot.slane %v497, 7
        %v500 = vrot.slane %v499, 4
        %v502 = vadd.f32 %v494, %v500
        %s503 = sld [smem:[#allocation11 + $0x2]]
        %v504 = vstv %s503
        %v505 = vadd.f32 %v502, %v504
        %s506 = sld [smem:[#allocation10 + $0x3]]
        %v507 = vstv %s506
        %v508 = vmul.f32 %v415, %v507
        %s509 = sld [smem:[#allocation10 + $0x83]]
        %v510 = vstv %s509
        %v511 = vmul.f32 %v415, %v510
        %v513 = vrot.slane %v511, 5
        %v514 = vrot.slane %v513, 4
        %v516 = vadd.f32 %v508, %v514
        %s517 = sld [smem:[#allocation10 + $0x103]]
        %v518 = vstv %s517
        %v519 = vmul.f32 %v415, %v518
        %v521 = vrot.slane %v519, 6
        %v522 = vrot.slane %v521, 4
        %v524 = vadd.f32 %v516, %v522
        %s525 = sld [smem:[#allocation10 + $0x183]]
        %v526 = vstv %s525
        %v527 = vmul.f32 %v415, %v526
        %v529 = vrot.slane %v527, 7
        %v530 = vrot.slane %v529, 4
        %v532 = vadd.f32 %v524, %v530
        %s533 = sld [smem:[#allocation11 + $0x3]]
        %v534 = vstv %s533
        %v535 = vadd.f32 %v532, %v534
        %v536 = vmax.f32 %v445, %v475
        %v537 = vmax.f32 %v536, %v505
        %v538 = vmax.f32 %v537, %v535
        %v539 = vsub.f32 %v445, %v538
        %v540 = vmul.f32 %v539, 1.442695
        %v541 = vpow.pop %v540
        %v542 = vsub.f32 %v475, %v538
        %v543 = vmul.f32 %v542, 1.442695
        %v544 = vpow.pop %v543
        %v545 = vsub.f32 %v505, %v538
        %v546 = vmul.f32 %v545, 1.442695
        %v547 = vpow.pop %v546
        %v548 = vsub.f32 %v535, %v538
        %v549 = vmul.f32 %v548, 1.442695
        %v550 = vpow.pop %v549
        %v551 = vadd.f32 %v541, %v544
        %v552 = vadd.f32 %v551, %v547
        %v553 = vadd.f32 %v552, %v550
        %v554 = vrcp.pop %v553
        %v555 = vmul.f32 %v541, %v554
        %v556 = vsub.f32 %v555, %v347
        %v557 = vmul.f32 %v544, %v554
        %v559 = vrot.slane %v347, 5
        %v560 = vrot.slane %v559, 4
        %v562 = vsub.f32 %v557, %v560
        %v563 = vmul.f32 %v547, %v554
        %v564 = vrot.slane %v347, 6
        %v565 = vrot.slane %v564, 4
        %v567 = vsub.f32 %v563, %v565
        %v568 = vmul.f32 %v550, %v554
        %v569 = vrot.slane %v347, 7
        %v570 = vrot.slane %v569, 4
        %v572 = vsub.f32 %v568, %v570
        %v573 = vmul.f32 %v556, %v417
        %v574 = vmul.f32 %v562, %v447
        %v575 = vadd.f32 %v573, %v574
        %v576 = vmul.f32 %v567, %v477
        %v577 = vadd.f32 %v575, %v576
        %v578 = vmul.f32 %v572, %v507
        %v579 = vadd.f32 %v577, %v578
        %v580 = vmul.f32 %v556, %v420
        %v581 = vmul.f32 %v562, %v450
        %v582 = vadd.f32 %v580, %v581
        %v583 = vmul.f32 %v567, %v480
        %v584 = vadd.f32 %v582, %v583
        %v585 = vmul.f32 %v572, %v510
        %v586 = vadd.f32 %v584, %v585
        %v587 = vmul.f32 %v556, %v428
        %v588 = vmul.f32 %v562, %v458
        %v589 = vadd.f32 %v587, %v588
        %v590 = vmul.f32 %v567, %v488
        %v591 = vadd.f32 %v589, %v590
        %v592 = vmul.f32 %v572, %v518
        %v593 = vadd.f32 %v591, %v592
        %v594 = vmul.f32 %v556, %v436
        %v595 = vmul.f32 %v562, %v466
        %v596 = vadd.f32 %v594, %v595
        %v597 = vmul.f32 %v567, %v496
        %v598 = vadd.f32 %v596, %v597
        %v599 = vmul.f32 %v572, %v526
        %v600 = vadd.f32 %v598, %v599
        %v601 = vmul.f32 %v579, %v579
        %v602 = vmul.f32 %v586, %v586
        %v603 = vadd.f32 %v601, %v602
        %v604 = vmul.f32 %v593, %v593
        %v605 = vadd.f32 %v603, %v604
        %v606 = vmul.f32 %v600, %v600
        %v607 = vadd.f32 %v605, %v606
        %v609 = vperm.slane %v607, 0
        %v610 = vperm.slane %v607, 4
        %v613 = vsel %vm368, %v609, 0.0
        %v614 = vsel %vm368, %v610, 0.0
        %v615 = vadd.f32 %v613, %v614
        %616 = vadd.xlane.f32.xlu0 %v615
        %v617 = vpop.xlane.xlu0 %616
        %v618 = vrot.slane %v617, 4
        %v619 = vadd.f32 %v617, %v618
        %v620 = vrot.slane %v619, 2
        %v621 = vadd.f32 %v619, %v620
        %v622 = vrot.slane %v621, 1
        %v623 = vadd.f32 %v621, %v622
        %s624 = vtos %v623
        %v625 = vstv %s624
        %v626 = vrsqrt.pop %v625
        %v627 = vmul.f32 %v626, %v625
        %v628 = vmul.f32 %v627, %v626
        %v629 = vmul.f32 0.5, %v628
        %v630 = vsub.f32 1.5, %v629
        %v631 = vmul.f32 %v626, %v630
        %v632 = vmul.f32 %v625, %v631
        %vm633 = vcmp.eq.f32.partialorder %v625, inf
        %v634 = vsel %vm633, %v625, %v632
        %vm635 = vcmp.eq.f32.partialorder %v625, 0.0
        %v636 = vand.u32 %v625, 2147483648
        %v637 = vsel %vm635, %v636, %v634
        %s638 = vtos %v637
        %s639 = sadd.f32 %s638, 1e-08
        %v640 = vstv %s639
        %v641 = vrcp.pop %v640
        %v642 = vmul.f32 %v640, %v641
        %v643 = vsub.f32 1.0, %v642
        %v644 = vmul.f32 %v641, %v643
        %v645 = vadd.f32 %v641, %v644
        %vm646 = vweird.f32 %v640
        %vm647 = vweird.f32 %v641
        %vm648 = vmor %vm646, %vm647
        %v649 = vsel %vm648, %v641, %v645
        %v650 = vand.u32 2147483647, %v640
        %vm651 = vcmp.eq.f32.partialorder %v650, 8.507059e+37
        %v652 = vand.u32 %v640, 2147483648
        %v653 = vor.u32 1.1754944e-38, %v652
        %v654 = vsel %vm651, %v653, %v649
        %s655 = vtos %v654
        %v656 = vstv %s655
        %v657 = vmul.f32 %v579, %v656
        %v658 = vmul.f32 %v586, %v656
        %v659 = vmul.f32 %v593, %v656
        %v660 = vmul.f32 %v600, %v656
        %v661 = vadd.f32 %v346, %v657
        %v663 = vrot.slane %v658, 7
        %v665 = vadd.f32 %v346, %v663
        %v667 = vrot.slane %v659, 6
        %v669 = vadd.f32 %v346, %v667
        %v671 = vrot.slane %v660, 5
        %v673 = vadd.f32 %v346, %v671
        %v674 = vmul.f32 %v661, %v417
        %v675 = vmul.f32 %v665, %v420
        %v677 = vrot.slane %v675, 5
        %v678 = vrot.slane %v677, 4
        %v680 = vadd.f32 %v674, %v678
        %v681 = vmul.f32 %v669, %v428
        %v683 = vrot.slane %v681, 6
        %v684 = vrot.slane %v683, 4
        %v686 = vadd.f32 %v680, %v684
        %v687 = vmul.f32 %v673, %v436
        %v689 = vrot.slane %v687, 7
        %v690 = vrot.slane %v689, 4
        %v692 = vadd.f32 %v686, %v690
        %v693 = vadd.f32 %v692, %v444
        %v694 = vmul.f32 %v661, %v447
        %v695 = vmul.f32 %v665, %v450
        %v697 = vrot.slane %v695, 5
        %v698 = vrot.slane %v697, 4
        %v700 = vadd.f32 %v694, %v698
        %v701 = vmul.f32 %v669, %v458
        %v703 = vrot.slane %v701, 6
        %v704 = vrot.slane %v703, 4
        %v706 = vadd.f32 %v700, %v704
        %v707 = vmul.f32 %v673, %v466
        %v709 = vrot.slane %v707, 7
        %v710 = vrot.slane %v709, 4
        %v712 = vadd.f32 %v706, %v710
        %v713 = vadd.f32 %v712, %v474
        %v714 = vmul.f32 %v661, %v477
        %v715 = vmul.f32 %v665, %v480
        %v717 = vrot.slane %v715, 5
        %v718 = vrot.slane %v717, 4
        %v720 = vadd.f32 %v714, %v718
        %v721 = vmul.f32 %v669, %v488
        %v723 = vrot.slane %v721, 6
        %v724 = vrot.slane %v723, 4
        %v726 = vadd.f32 %v720, %v724
        %v727 = vmul.f32 %v673, %v496
        %v729 = vrot.slane %v727, 7
        %v730 = vrot.slane %v729, 4
        %v732 = vadd.f32 %v726, %v730
        %v733 = vadd.f32 %v732, %v504
        %v734 = vmul.f32 %v661, %v507
        %v735 = vmul.f32 %v665, %v510
        %v737 = vrot.slane %v735, 5
        %v738 = vrot.slane %v737, 4
        %v740 = vadd.f32 %v734, %v738
        %v741 = vmul.f32 %v669, %v518
        %v743 = vrot.slane %v741, 6
        %v744 = vrot.slane %v743, 4
        %v746 = vadd.f32 %v740, %v744
        %v747 = vmul.f32 %v673, %v526
        %v749 = vrot.slane %v747, 7
        %v750 = vrot.slane %v749, 4
        %v752 = vadd.f32 %v746, %v750
        %v753 = vadd.f32 %v752, %v534
        %v754 = vmax.f32 %v693, %v713
        %v755 = vmax.f32 %v754, %v733
        %v756 = vmax.f32 %v755, %v753
        %v757 = vsub.f32 %v693, %v756
        %v758 = vmul.f32 %v757, 1.442695
        %v759 = vpow.pop %v758
        %v760 = vsub.f32 %v713, %v756
        %v761 = vmul.f32 %v760, 1.442695
        %v762 = vpow.pop %v761
        %v763 = vsub.f32 %v733, %v756
        %v764 = vmul.f32 %v763, 1.442695
        %v765 = vpow.pop %v764
        %v766 = vsub.f32 %v753, %v756
        %v767 = vmul.f32 %v766, 1.442695
        %v768 = vpow.pop %v767
        %v769 = vadd.f32 %v759, %v762
        %v770 = vadd.f32 %v769, %v765
        %v771 = vadd.f32 %v770, %v768
        %v772 = vlog2.pop %v771
        %v773 = vmul.f32 %v772, 0.6931472
        %v774 = vadd.f32 %v347, 1e-16
        %v775 = vlog2.pop %v774
        %v776 = vmul.f32 %v775, 0.6931472
        %v777 = vsub.f32 %v757, %v773
        %v778 = vsub.f32 %v776, %v777
        %v779 = vmul.f32 %v347, %v778
        %v780 = vsub.f32 %v760, %v773
        %v782 = vrot.slane %v780, 7
        %v784 = vsub.f32 %v776, %v782
        %v785 = vmul.f32 %v347, %v784
        %v787 = vrot.slane %v785, 5
        %v788 = vrot.slane %v787, 4
        %v790 = vadd.f32 %v779, %v788
        %v791 = vsub.f32 %v763, %v773
        %v793 = vrot.slane %v791, 6
        %v795 = vsub.f32 %v776, %v793
        %v796 = vmul.f32 %v347, %v795
        %v798 = vrot.slane %v796, 6
        %v799 = vrot.slane %v798, 4
        %v801 = vadd.f32 %v790, %v799
        %v802 = vsub.f32 %v766, %v773
        %v804 = vrot.slane %v802, 5
        %v806 = vsub.f32 %v776, %v804
        %v807 = vmul.f32 %v347, %v806
        %v809 = vrot.slane %v807, 7
        %v810 = vrot.slane %v809, 4
        %v812 = vadd.f32 %v801, %v810
        %v814 = vperm.slane %v812, 0
        %v815 = vperm.slane %v812, 4
        %v818 = vsel %vm368, %v814, 0.0
        %v819 = vsel %vm368, %v815, 0.0
        %v820 = vadd.f32 %v818, %v819
        %821 = vadd.xlane.f32.xlu0 %v820
        %v822 = vpop.xlane.xlu0 %821
        %v823 = vrot.slane %v822, 4
        %v824 = vadd.f32 %v822, %v823
        %v825 = vrot.slane %v824, 2
        %v826 = vadd.f32 %v824, %v825
        %v827 = vrot.slane %v826, 1
        %v828 = vadd.f32 %v826, %v827
        %s829 = vtos %v828
        %v830 = vstv %s829
        %831 = vst [vmem:[%s345] sm:$0x1] %v830
        %s832 = sand.u32 %s155, 1
        %s833 = scalar_lea.sflag [#allocation4], %s832
        %s834 = sand.u32 %s155, 1
        %s835 = scalar_lea.vmem [#allocation12], %s834
        // Predicated region
        $region61: #{tpu_custom_call.1} parent=39 // pred_check
          %p836 = pneg %p165
        $region62: #{tpu_custom_call.1} parent=39 // pred_check_branch
          %838 = sbr.rel (%p836) target = $region64
        $region63: #{tpu_custom_call.1} parent=39 // pred_region
          %840 = vsyncadd %s833, 0
          %s841 = scalar_lea.hbm %s5, %s27
          %s843 = sshll.u32 %s835, 4
          %s844 = int_to_ptr.vmem [resolvable:$true] %s843
          %s845 = sshll.u32 %s841, 4
          %s846 = int_to_ptr.hbm [resolvable:$true] %s845
          %848 = dma.vmem_to_hbm [thread:$0]  %s844, 16, %s846, %s833
        $region64: #{tpu_custom_call.1} parent=39 // pred_fallthru
          _
      $region40: #{tpu_custom_call.1} parent=5 // pred_fallthru
        _
      %p849 = scmp.le.s32.totalorder 2, %s22
      // Predicated region
      $region65: #{tpu_custom_call.1} parent=5 // pred_check
        %p850 = pneg %p849
      $region66: #{tpu_custom_call.1} parent=5 // pred_check_branch
        %852 = sbr.rel (%p850) target = $region68
      $region67: #{tpu_custom_call.1} parent=5 // pred_region
        %s853 = ssub.s32 %s22, 2
        // Predicated region
        $region69: #{tpu_custom_call.1} parent=67 // pred_check
          %p854 = pneg %p171
        $region70: #{tpu_custom_call.1} parent=67 // pred_check_branch
          %856 = sbr.rel (%p854) target = $region72
        $region71: #{tpu_custom_call.1} parent=67 // pred_region
          %s857 = sand.u32 %s156, 1
          %s858 = scalar_lea.sflag [#allocation4], %s857
          %s859 = sand.u32 %s156, 1
          %s860 = scalar_lea.vmem [#allocation12], %s859
          %862 = dma.done %s858, 16
        $region72: #{tpu_custom_call.1} parent=67 // pred_fallthru
          _
      $region68: #{tpu_custom_call.1} parent=5 // pred_fallthru
        _
    $region6: #{tpu_custom_call.1} parent=1 // loop_footer
      %s26 = sadd.s32 1, %s22
    $region7: #{tpu_custom_call.1} parent=1 // loop_footer_branch
      %21 = sbr.rel target = $region3
    $region8: #{tpu_custom_call.1} parent=1 // loop_exit
      _
    %863 = vsyncpa [#allocation3], 1
    %s864 = scalar_lea.sflag [#allocation3], 1
    %865 = vsyncpa %s864, 1
    %866 = vsyncpa [#allocation8], 1
    %s867 = scalar_lea.sflag [#allocation8], 1
    %868 = vsyncpa %s867, 1
    %869 = vsyncpa [#allocation4], 1
    %s870 = scalar_lea.sflag [#allocation4], 1
    %871 = vsyncpa %s870, 1
    %872 = vsyncpa [#allocation5], 1
    %s873 = scalar_lea.sflag [#allocation5], 1
    %874 = vsyncpa %s873, 1
    %875 = vsyncpa [#allocation6], 1
    %s876 = scalar_lea.sflag [#allocation6], 1
    %877 = vsyncpa %s876, 1

</llo_original>
